<compile_context>
chip_gen: v5e
topology: v5e:2x2
jax: 0.10.0
libtpu: 0.0.40
codegen_flags: <defaults>
</compile_context>

<pallas_src>
import jax
import jax.numpy as jnp
from jax.experimental import pallas as pl
from jax.experimental.pallas import tpu as pltpu

LANE = 128      # lane width: hidden feature axis is padded to this
SUBLANE = 8     # sublane width: batch / contraction axes rounded to this


def _round_up(x, m):
    return ((x + m - 1) // m) * m


def _cdiv(a, b):
    return -(-a // b)


# ----------------------------------------------------------------------------
# Kernel
# ----------------------------------------------------------------------------
def bob_kernel(ct_ref, key_ref, w1c_ref, w1k_ref, b1_ref, w2_ref, b2_ref,
               w3_ref, b3_ref, out_ref):
    wdt = w1c_ref.dtype  # f32 or bf16; accumulation is always f32

    # Layer 1: (ct | key) @ W1 + b1 without materializing the concat.
    h1 = jnp.dot(ct_ref[...].astype(wdt), w1c_ref[...],
                 preferred_element_type=jnp.float32)
    h1 = h1 + jnp.dot(key_ref[...].astype(wdt), w1k_ref[...],
                      preferred_element_type=jnp.float32)
    h1 = jnp.maximum(h1 + b1_ref[...], 0.0)                       # [TB, Hp]

    # Layer 2 + ReLU
    h2 = jnp.dot(h1.astype(wdt), w2_ref[...],
                 preferred_element_type=jnp.float32)
    h2 = jnp.maximum(h2 + b2_ref[...], 0.0)                       # [TB, Hp]

    # Layer 3 + Sigmoid (exp lands on the EUP); output is logical-width.
    h3 = jnp.dot(h2.astype(wdt), w3_ref[...],
                 preferred_element_type=jnp.float32)
    out_ref[...] = jax.nn.sigmoid(h3 + b3_ref[...]).astype(out_ref.dtype)


# ----------------------------------------------------------------------------
# Wrapper
# ----------------------------------------------------------------------------
def bob_forward(ct, key, padded_params, *, block_batch=None,
                max_block_batch=512):
    """ct, key: [batch, seq_len] f32. Returns [batch, seq_len] f32."""
    w1c, w1k, b1, w2, b2, w3, b3 = padded_params
    batch, seq_len = ct.shape
    sk = w1c.shape[0]        # seq_len rounded up to a sublane multiple
    out_len = w3.shape[1]    # logical seq_len (output is NOT lane-padded)

    if block_batch is None:
        # Target ~2 grid steps so v7x's two TensorCores both get work, capped
        # at 512 rows (MXU fill vs. h1/h2 vreg-spill sweet spot).
        b8 = _round_up(batch, SUBLANE)
        block_batch = min(_round_up(_cdiv(b8, 2), SUBLANE), max_block_batch)
    grid_steps = _cdiv(batch, block_batch)
    b_pad = grid_steps * block_batch

    # Only pad when actually needed (demo shape: no padding at all).
    if (b_pad, sk) != (batch, seq_len):
        ct = jnp.zeros((b_pad, sk), ct.dtype).at[:batch, :seq_len].set(ct)
        key = jnp.zeros((b_pad, sk), key.dtype).at[:batch, :seq_len].set(key)

    row_in = pl.BlockSpec((block_batch, sk), lambda i: (i, 0))
    row_out = pl.BlockSpec((block_batch, out_len), lambda i: (i, 0))
    # Weights/biases: full-array blocks with a constant index map -> fetched
    # once, VMEM-resident across all grid steps.
    const = lambda a: pl.BlockSpec(a.shape, lambda i: (0, 0))

    out = pl.pallas_call(
        bob_kernel,
        out_shape=jax.ShapeDtypeStruct((b_pad, out_len), jnp.float32),
        grid=(grid_steps,),
        in_specs=[
            row_in, row_in,
            const(w1c), const(w1k), const(b1),
            const(w2), const(b2),
            const(w3), const(b3),
        ],
        out_specs=row_out,
        compiler_params=pltpu.CompilerParams(
            dimension_semantics=("parallel",)),
    )(ct, key, w1c, w1k, b1, w2, b2, w3, b3)

    if b_pad != batch:
        out = out[:batch]
    return out


# ----------------------------------------------------------------------------
# Parameter init (matches the PyTorch module) + one-time padding / split
# ----------------------------------------------------------------------------
def xavier_uniform(key, fan_in, fan_out):
    # torch.nn.init.xavier_uniform_ on a [out, in] weight; stored transposed
    # [in, out] so the kernel does x @ W.
    limit = (6.0 / (fan_in + fan_out)) ** 0.5
    return jax.random.uniform(key, (fan_in, fan_out), jnp.float32,
                              minval=-limit, maxval=limit)


def bias_init(key, fan_in, fan_out):
    # nn.Linear default bias init: U(-1/sqrt(fan_in), 1/sqrt(fan_in))
    bound = 1.0 / (fan_in ** 0.5)
    return jax.random.uniform(key, (1, fan_out), jnp.float32,
                              minval=-bound, maxval=bound)


def make_params(seq_len, hidden, key):
    k1, k2, k3, k4, k5, k6 = jax.random.split(key, 6)
    w1 = xavier_uniform(k1, 2 * seq_len, hidden)
    b1 = bias_init(k2, 2 * seq_len, hidden)
    w2 = xavier_uniform(k3, hidden, hidden)
    b2 = bias_init(k4, hidden, hidden)
    w3 = xavier_uniform(k5, hidden, seq_len)
    b3 = bias_init(k6, hidden, seq_len)
    return (w1, b1, w2, b2, w3, b3)


def pad_params(params, seq_len, hidden, weight_dtype=jnp.float32):
    """Split w1 into ct/key halves; pad hidden axis to LANE, seq (contraction)
    axis to SUBLANE.  Output axis of w3/b3 stays at the logical seq_len.
    Zero padding guarantees ReLU(0 + 0) = 0 in padded hidden columns."""
    w1, b1, w2, b2, w3, b3 = params
    sk = _round_up(seq_len, SUBLANE)
    hp = _round_up(hidden, LANE)
    w1c = jnp.zeros((sk, hp), weight_dtype).at[:seq_len, :hidden].set(
        w1[:seq_len].astype(weight_dtype))
    w1k = jnp.zeros((sk, hp), weight_dtype).at[:seq_len, :hidden].set(
        w1[seq_len:].astype(weight_dtype))
    b1p = jnp.zeros((1, hp), jnp.float32).at[:, :hidden].set(b1)
    w2p = jnp.zeros((hp, hp), weight_dtype).at[:hidden, :hidden].set(
        w2.astype(weight_dtype))
    b2p = jnp.zeros((1, hp), jnp.float32).at[:, :hidden].set(b2)
    w3p = jnp.zeros((hp, seq_len), weight_dtype).at[:hidden, :].set(
        w3.astype(weight_dtype))
    b3p = b3.astype(jnp.float32)          # (1, seq_len), unpadded
    return (w1c, w1k, b1p, w2p, b2p, w3p, b3p)


# ----------------------------------------------------------------------------
# Pure-JAX reference (unpadded, mirrors the PyTorch forward)
# ----------------------------------------------------------------------------
def bob_reference(ct, key, params):
    w1, b1, w2, b2, w3, b3 = params
    x = jnp.concatenate([ct, key], axis=-1)
    h = jnp.maximum(x @ w1 + b1, 0.0)
    h = jnp.maximum(h @ w2 + b2, 0.0)
    return jax.nn.sigmoid(h @ w3 + b3)


if __name__ == "__main__":
    batch, seq_len, hidden = 64, 8, 32

    root = jax.random.PRNGKey(0)
    k_ct, k_key, k_params = jax.random.split(root, 3)

    ct = jax.random.normal(k_ct, (batch, seq_len), jnp.float32)
    key = jax.random.normal(k_key, (batch, seq_len), jnp.float32)

    params = make_params(seq_len, hidden, k_params)
    ref = bob_reference(ct, key, params)

    # f32 weights: exact comparison against the reference.
    pp_f32 = pad_params(params, seq_len, hidden, jnp.float32)
    out = jax.block_until_ready(bob_forward(ct, key, pp_f32))
    assert out.shape == (batch, seq_len)
    assert jnp.allclose(out, ref, atol=1e-5, rtol=1e-5)

    # bf16 weights (recommended on v6e/v7x: halves weight VMEM/HBM, matches
    # the bf16-native MXU); f32 accumulation + f32 epilogue keeps error tiny.
    pp_bf16 = pad_params(params, seq_len, hidden, jnp.bfloat16)
    out_bf16 = jax.block_until_ready(bob_forward(ct, key, pp_bf16))
    assert out_bf16.shape == (batch, seq_len)
    assert jnp.allclose(out_bf16, ref, atol=5e-2)

    print("KERNEL_OK")
</pallas_src>

<mosaic_0001>
module attributes {stable_mosaic.version = 11 : i64} {
  func.func @bob_kernel(%arg0: i32, %arg1: memref<32x8xf32, #tpu.memory_space<vmem>>, %arg2: memref<32x8xf32, #tpu.memory_space<vmem>>, %arg3: memref<8x128xf32, #tpu.memory_space<vmem>>, %arg4: memref<8x128xf32, #tpu.memory_space<vmem>>, %arg5: memref<1x128xf32, #tpu.memory_space<vmem>>, %arg6: memref<128x128xf32, #tpu.memory_space<vmem>>, %arg7: memref<1x128xf32, #tpu.memory_space<vmem>>, %arg8: memref<128x8xf32, #tpu.memory_space<vmem>>, %arg9: memref<1x8xf32, #tpu.memory_space<vmem>>, %arg10: memref<32x8xf32, #tpu.memory_space<vmem>>) attributes {dimension_semantics = [#tpu.dimension_semantics<parallel>], iteration_bounds = array<i64: 2>, scalar_prefetch = 0 : i64, scratch_operands = 0 : i64, tpu.core_type = #tpu.core_type<tc>, window_params = [{transform_indices = @transform_0, window_bounds = array<i64: 32, 8>}, {transform_indices = @transform_1, window_bounds = array<i64: 32, 8>}, {pipeline_mode = #tpu.pipeline_mode<synchronous>, transform_indices = @transform_2, window_bounds = array<i64: 8, 128>}, {pipeline_mode = #tpu.pipeline_mode<synchronous>, transform_indices = @transform_3, window_bounds = array<i64: 8, 128>}, {pipeline_mode = #tpu.pipeline_mode<synchronous>, transform_indices = @transform_4, window_bounds = array<i64: 1, 128>}, {pipeline_mode = #tpu.pipeline_mode<synchronous>, transform_indices = @transform_5, window_bounds = array<i64: 128, 128>}, {pipeline_mode = #tpu.pipeline_mode<synchronous>, transform_indices = @transform_6, window_bounds = array<i64: 1, 128>}, {pipeline_mode = #tpu.pipeline_mode<synchronous>, transform_indices = @transform_7, window_bounds = array<i64: 128, 8>}, {pipeline_mode = #tpu.pipeline_mode<synchronous>, transform_indices = @transform_8, window_bounds = array<i64: 1, 8>}, {transform_indices = @transform_9, window_bounds = array<i64: 32, 8>}]} {
    %c0 = arith.constant 0 : index
    %c0_0 = arith.constant 0 : index
    %0 = vector.load %arg1[%c0, %c0_0] : memref<32x8xf32, #tpu.memory_space<vmem>>, vector<32x8xf32>
    %c0_1 = arith.constant 0 : index
    %c0_2 = arith.constant 0 : index
    %1 = vector.load %arg3[%c0_1, %c0_2] : memref<8x128xf32, #tpu.memory_space<vmem>>, vector<8x128xf32>
    %cst = arith.constant dense<0.000000e+00> : vector<32x128xf32>
    %2 = tpu.matmul %0, %1, %cst {dimension_numbers = #tpu.dot_dimension_numbers<[1], [0], [0], [1], [0, 0, 1, 1], [], []>} : vector<32x8xf32>, vector<8x128xf32>, vector<32x128xf32> -> vector<32x128xf32>
    %c0_3 = arith.constant 0 : index
    %c0_4 = arith.constant 0 : index
    %3 = vector.load %arg2[%c0_3, %c0_4] : memref<32x8xf32, #tpu.memory_space<vmem>>, vector<32x8xf32>
    %c0_5 = arith.constant 0 : index
    %c0_6 = arith.constant 0 : index
    %4 = vector.load %arg4[%c0_5, %c0_6] : memref<8x128xf32, #tpu.memory_space<vmem>>, vector<8x128xf32>
    %cst_7 = arith.constant dense<0.000000e+00> : vector<32x128xf32>
    %5 = tpu.matmul %3, %4, %cst_7 {dimension_numbers = #tpu.dot_dimension_numbers<[1], [0], [0], [1], [0, 0, 1, 1], [], []>} : vector<32x8xf32>, vector<8x128xf32>, vector<32x128xf32> -> vector<32x128xf32>
    %6 = arith.addf %2, %5 : vector<32x128xf32>
    %c0_8 = arith.constant 0 : index
    %c0_9 = arith.constant 0 : index
    %7 = vector.load %arg5[%c0_8, %c0_9] : memref<1x128xf32, #tpu.memory_space<vmem>>, vector<1x128xf32>
    %8 = vector.broadcast %7 : vector<1x128xf32> to vector<32x128xf32>
    %9 = arith.addf %6, %8 : vector<32x128xf32>
    %cst_10 = arith.constant 0.000000e+00 : f32
    %10 = vector.broadcast %cst_10 : f32 to vector<32x128xf32>
    %11 = arith.maximumf %9, %10 : vector<32x128xf32>
    %c0_11 = arith.constant 0 : index
    %c0_12 = arith.constant 0 : index
    %12 = vector.load %arg6[%c0_11, %c0_12] : memref<128x128xf32, #tpu.memory_space<vmem>>, vector<128x128xf32>
    %cst_13 = arith.constant dense<0.000000e+00> : vector<32x128xf32>
    %13 = tpu.matmul %11, %12, %cst_13 {dimension_numbers = #tpu.dot_dimension_numbers<[1], [0], [0], [1], [0, 0, 1, 1], [], []>} : vector<32x128xf32>, vector<128x128xf32>, vector<32x128xf32> -> vector<32x128xf32>
    %c0_14 = arith.constant 0 : index
    %c0_15 = arith.constant 0 : index
    %14 = vector.load %arg7[%c0_14, %c0_15] : memref<1x128xf32, #tpu.memory_space<vmem>>, vector<1x128xf32>
    %15 = vector.broadcast %14 : vector<1x128xf32> to vector<32x128xf32>
    %16 = arith.addf %13, %15 : vector<32x128xf32>
    %cst_16 = arith.constant 0.000000e+00 : f32
    %17 = vector.broadcast %cst_16 : f32 to vector<32x128xf32>
    %18 = arith.maximumf %16, %17 : vector<32x128xf32>
    %c0_17 = arith.constant 0 : index
    %c0_18 = arith.constant 0 : index
    %19 = vector.load %arg8[%c0_17, %c0_18] : memref<128x8xf32, #tpu.memory_space<vmem>>, vector<128x8xf32>
    %cst_19 = arith.constant dense<0.000000e+00> : vector<32x8xf32>
    %20 = tpu.matmul %18, %19, %cst_19 {dimension_numbers = #tpu.dot_dimension_numbers<[1], [0], [0], [1], [0, 0, 1, 1], [], []>} : vector<32x128xf32>, vector<128x8xf32>, vector<32x8xf32> -> vector<32x8xf32>
    %c0_20 = arith.constant 0 : index
    %c0_21 = arith.constant 0 : index
    %21 = vector.load %arg9[%c0_20, %c0_21] : memref<1x8xf32, #tpu.memory_space<vmem>>, vector<1x8xf32>
    %22 = vector.broadcast %21 : vector<1x8xf32> to vector<32x8xf32>
    %23 = arith.addf %20, %22 : vector<32x8xf32>
    %24 = arith.negf %23 : vector<32x8xf32>
    %25 = math.exp %24 : vector<32x8xf32>
    %cst_22 = arith.constant 1.000000e+00 : f32
    %26 = vector.broadcast %cst_22 : f32 to vector<32x8xf32>
    %27 = arith.addf %26, %25 : vector<32x8xf32>
    %28 = arith.divf %26, %27 : vector<32x8xf32>
    %c0_23 = arith.constant 0 : index
    %c0_24 = arith.constant 0 : index
    %29 = vector.load %arg10[%c0_23, %c0_24] : memref<32x8xf32, #tpu.memory_space<vmem>>, vector<32x8xf32>
    tpu.vector_store %arg10[%c0_23, %c0_24], %28 {strides = array<i32>} : memref<32x8xf32, #tpu.memory_space<vmem>>, vector<32x8xf32>,
    return
  }
  func.func @transform_0(%arg0: i32) -> (i32, i32) {
    %c0_i32 = arith.constant 0 : i32
    %c0_i32_0 = arith.constant 0 : i32
    return %arg0, %c0_i32 : i32, i32
  }
  func.func @transform_1(%arg0: i32) -> (i32, i32) {
    %c0_i32 = arith.constant 0 : i32
    %c0_i32_0 = arith.constant 0 : i32
    return %arg0, %c0_i32 : i32, i32
  }
  func.func @transform_2(%arg0: i32) -> (i32, i32) {
    %c0_i32 = arith.constant 0 : i32
    %c0_i32_0 = arith.constant 0 : i32
    %c0_i32_1 = arith.constant 0 : i32
    return %c0_i32, %c0_i32_0 : i32, i32
  }
  func.func @transform_3(%arg0: i32) -> (i32, i32) {
    %c0_i32 = arith.constant 0 : i32
    %c0_i32_0 = arith.constant 0 : i32
    %c0_i32_1 = arith.constant 0 : i32
    return %c0_i32, %c0_i32_0 : i32, i32
  }
  func.func @transform_4(%arg0: i32) -> (i32, i32) {
    %c0_i32 = arith.constant 0 : i32
    %c0_i32_0 = arith.constant 0 : i32
    %c0_i32_1 = arith.constant 0 : i32
    return %c0_i32, %c0_i32_0 : i32, i32
  }
  func.func @transform_5(%arg0: i32) -> (i32, i32) {
    %c0_i32 = arith.constant 0 : i32
    %c0_i32_0 = arith.constant 0 : i32
    %c0_i32_1 = arith.constant 0 : i32
    return %c0_i32, %c0_i32_0 : i32, i32
  }
  func.func @transform_6(%arg0: i32) -> (i32, i32) {
    %c0_i32 = arith.constant 0 : i32
    %c0_i32_0 = arith.constant 0 : i32
    %c0_i32_1 = arith.constant 0 : i32
    return %c0_i32, %c0_i32_0 : i32, i32
  }
  func.func @transform_7(%arg0: i32) -> (i32, i32) {
    %c0_i32 = arith.constant 0 : i32
    %c0_i32_0 = arith.constant 0 : i32
    %c0_i32_1 = arith.constant 0 : i32
    return %c0_i32, %c0_i32_0 : i32, i32
  }
  func.func @transform_8(%arg0: i32) -> (i32, i32) {
    %c0_i32 = arith.constant 0 : i32
    %c0_i32_0 = arith.constant 0 : i32
    %c0_i32_1 = arith.constant 0 : i32
    return %c0_i32, %c0_i32_0 : i32, i32
  }
  func.func @transform_9(%arg0: i32) -> (i32, i32) {
    %c0_i32 = arith.constant 0 : i32
    %c0_i32_0 = arith.constant 0 : i32
    return %arg0, %c0_i32 : i32, i32
  }
}

</mosaic_0001>

<llo_original>
// kernel: tpu_custom_call.1
$region0: #{tpu_custom_call.1}
  #allocation0 [shape = 'u32[]', space=smem, size = 0x4, offset = 0x4, fixed_abs, tag = 'smem constant byte address 0x4 - core index']
  #allocation1 [shape = 'u32[72,128]{1,0:T(1,128)}', space=vmem, size = 0x9000, scoped, tag = 'internal scratch']
  %s0 = inlined_call_operand.vmem [shape: f32[64,8], index: 0, kind: input, shape index: {}]
  %s1 = inlined_call_operand.vmem [shape: f32[64,8], index: 1, kind: input, shape index: {}]
  %s2 = inlined_call_operand.vmem [shape: f32[8,128], index: 2, kind: input, shape index: {}]
  %s3 = inlined_call_operand.vmem [shape: f32[8,128], index: 3, kind: input, shape index: {}]
  %s4 = inlined_call_operand.vmem [shape: f32[1,128], index: 4, kind: input, shape index: {}]
  %s5 = inlined_call_operand.vmem [shape: f32[128,128], index: 5, kind: input, shape index: {}]
  %s6 = inlined_call_operand.vmem [shape: f32[1,128], index: 6, kind: input, shape index: {}]
  %s7 = inlined_call_operand.vmem [shape: f32[128,8], index: 7, kind: input, shape index: {}]
  %s8 = inlined_call_operand.vmem [shape: f32[1,8], index: 8, kind: input, shape index: {}]
  %s9 = inlined_call_operand.vmem [shape: f32[64,8], index: 9, kind: output, shape index: {}]
  %s10 = sld [smem:[#allocation0]]
  $region69: #{tpu_custom_call.1} parent=0
    _
  %s12 = ssub.s32 1, %s10
  %s13 = scalar_select 0, %s12, %s10
  loop: start=0, step=1, limit=4
  $region2: #{tpu_custom_call.1} parent=0 // loop_pre_header
    _
  $region3: #{tpu_custom_call.1} parent=0 // loop_header
    %s15 = sphi 0, %s19
    %p16 = scmp.ge.s32.totalorder %s15, 4
    %s25 = sphi 0, %s27
    %s28 = sphi 0, %s25
    %s29 = sphi 0, %s28
    %s45 = sphi 0, %s29
    %s51 = sphi 0, %s53
    %s54 = sphi 0, %s51
    %s55 = sphi 0, %s54
    %s71 = sphi 0, %s55
    %s75 = sphi 0, %s75
    %s77 = sphi 0, %s75
    %s78 = sphi 0, %s77
    %s92 = sphi 0, %s78
    %s96 = sphi 0, %s96
    %s98 = sphi 0, %s96
    %s99 = sphi 0, %s98
    %s113 = sphi 0, %s99
    %s117 = sphi 0, %s117
    %s119 = sphi 0, %s117
    %s120 = sphi 0, %s119
    %s134 = sphi 0, %s120
    %s138 = sphi 0, %s138
    %s140 = sphi 0, %s138
    %s141 = sphi 0, %s140
    %s155 = sphi 0, %s141
    %s159 = sphi 0, %s159
    %s161 = sphi 0, %s159
    %s162 = sphi 0, %s161
    %s176 = sphi 0, %s162
    %s180 = sphi 0, %s180
    %s182 = sphi 0, %s180
    %s183 = sphi 0, %s182
    %s197 = sphi 0, %s183
    %s201 = sphi 0, %s201
    %s203 = sphi 0, %s201
    %s204 = sphi 0, %s203
    %s218 = sphi 0, %s204
    %s224 = sphi 0, %s226
    %s227 = sphi 0, %s224
    %s228 = sphi 0, %s227
    %s244 = sphi 0, %s228
  $region4: #{tpu_custom_call.1} parent=0 // loop_header_branch
    %18 = sbr.rel (%p16) target = $region8
  $region5: #{tpu_custom_call.1} parent=0 // loop_body
    %s20 = ssub.s32 %s15, 1
    %s21 = ssub.s32 %s15, 2
    %s22 = sadd.s32 %s15, 1
    %s23 = ssub.s32 %s15, %s22
    %p24 = scmp.eq.s32.totalorder %s23, 0
    %s26 = sadd.s32 %s25, 1
    %s27 = scalar_select %p24, %s25, %s26
    %p30 = pneg %p24
    %p31 = scmp.eq.s32.totalorder %s15, 1
    %p32 = por %p30, %p31
    %p33 = scmp.ne.s32.totalorder %s25, %s28
    %p34 = scmp.eq.s32.totalorder %s15, 0
    %p35 = por %p33, %p34
    %p36 = scmp.ne.s32.totalorder %s25, %s28
    %p37 = scmp.eq.s32.totalorder %s20, 1
    %p38 = por %p36, %p37
    %p39 = scmp.ne.s32.totalorder %s28, %s29
    %p40 = scmp.eq.s32.totalorder %s20, 0
    %p41 = por %p39, %p40
    %p42 = scmp.ne.s32.totalorder %s28, %s29
    %p43 = scmp.eq.s32.totalorder %s21, 1
    %p44 = por %p42, %p43
    %p46 = scmp.ne.s32.totalorder %s29, %s45
    %p47 = scmp.eq.s32.totalorder %s21, 0
    %p48 = por %p46, %p47
    %s49 = ssub.s32 %s15, %s22
    %p50 = scmp.eq.s32.totalorder %s49, 0
    %s52 = sadd.s32 %s51, 1
    %s53 = scalar_select %p50, %s51, %s52
    %p56 = pneg %p50
    %p57 = scmp.eq.s32.totalorder %s15, 1
    %p58 = por %p56, %p57
    %p59 = scmp.ne.s32.totalorder %s51, %s54
    %p60 = scmp.eq.s32.totalorder %s15, 0
    %p61 = por %p59, %p60
    %p62 = scmp.ne.s32.totalorder %s51, %s54
    %p63 = scmp.eq.s32.totalorder %s20, 1
    %p64 = por %p62, %p63
    %p65 = scmp.ne.s32.totalorder %s54, %s55
    %p66 = scmp.eq.s32.totalorder %s20, 0
    %p67 = por %p65, %p66
    %p68 = scmp.ne.s32.totalorder %s54, %s55
    %p69 = scmp.eq.s32.totalorder %s21, 1
    %p70 = por %p68, %p69
    %p72 = scmp.ne.s32.totalorder %s55, %s71
    %p73 = scmp.eq.s32.totalorder %s21, 0
    %p74 = por %p72, %p73
    %s76 = sadd.s32 %s75, 1
    %p79 = scmp.eq.s32.totalorder %s15, 1
    %p80 = scmp.ne.s32.totalorder %s75, %s77
    %p81 = scmp.eq.s32.totalorder %s15, 0
    %p82 = por %p80, %p81
    %p83 = scmp.ne.s32.totalorder %s75, %s77
    %p84 = scmp.eq.s32.totalorder %s20, 1
    %p85 = por %p83, %p84
    %p86 = scmp.ne.s32.totalorder %s77, %s78
    %p87 = scmp.eq.s32.totalorder %s20, 0
    %p88 = por %p86, %p87
    %p89 = scmp.ne.s32.totalorder %s77, %s78
    %p90 = scmp.eq.s32.totalorder %s21, 1
    %p91 = por %p89, %p90
    %p93 = scmp.ne.s32.totalorder %s78, %s92
    %p94 = scmp.eq.s32.totalorder %s21, 0
    %p95 = por %p93, %p94
    %s97 = sadd.s32 %s96, 1
    %p100 = scmp.eq.s32.totalorder %s15, 1
    %p101 = scmp.ne.s32.totalorder %s96, %s98
    %p102 = scmp.eq.s32.totalorder %s15, 0
    %p103 = por %p101, %p102
    %p104 = scmp.ne.s32.totalorder %s96, %s98
    %p105 = scmp.eq.s32.totalorder %s20, 1
    %p106 = por %p104, %p105
    %p107 = scmp.ne.s32.totalorder %s98, %s99
    %p108 = scmp.eq.s32.totalorder %s20, 0
    %p109 = por %p107, %p108
    %p110 = scmp.ne.s32.totalorder %s98, %s99
    %p111 = scmp.eq.s32.totalorder %s21, 1
    %p112 = por %p110, %p111
    %p114 = scmp.ne.s32.totalorder %s99, %s113
    %p115 = scmp.eq.s32.totalorder %s21, 0
    %p116 = por %p114, %p115
    %s118 = sadd.s32 %s117, 1
    %p121 = scmp.eq.s32.totalorder %s15, 1
    %p122 = scmp.ne.s32.totalorder %s117, %s119
    %p123 = scmp.eq.s32.totalorder %s15, 0
    %p124 = por %p122, %p123
    %p125 = scmp.ne.s32.totalorder %s117, %s119
    %p126 = scmp.eq.s32.totalorder %s20, 1
    %p127 = por %p125, %p126
    %p128 = scmp.ne.s32.totalorder %s119, %s120
    %p129 = scmp.eq.s32.totalorder %s20, 0
    %p130 = por %p128, %p129
    %p131 = scmp.ne.s32.totalorder %s119, %s120
    %p132 = scmp.eq.s32.totalorder %s21, 1
    %p133 = por %p131, %p132
    %p135 = scmp.ne.s32.totalorder %s120, %s134
    %p136 = scmp.eq.s32.totalorder %s21, 0
    %p137 = por %p135, %p136
    %s139 = sadd.s32 %s138, 1
    %p142 = scmp.eq.s32.totalorder %s15, 1
    %p143 = scmp.ne.s32.totalorder %s138, %s140
    %p144 = scmp.eq.s32.totalorder %s15, 0
    %p145 = por %p143, %p144
    %p146 = scmp.ne.s32.totalorder %s138, %s140
    %p147 = scmp.eq.s32.totalorder %s20, 1
    %p148 = por %p146, %p147
    %p149 = scmp.ne.s32.totalorder %s140, %s141
    %p150 = scmp.eq.s32.totalorder %s20, 0
    %p151 = por %p149, %p150
    %p152 = scmp.ne.s32.totalorder %s140, %s141
    %p153 = scmp.eq.s32.totalorder %s21, 1
    %p154 = por %p152, %p153
    %p156 = scmp.ne.s32.totalorder %s141, %s155
    %p157 = scmp.eq.s32.totalorder %s21, 0
    %p158 = por %p156, %p157
    %s160 = sadd.s32 %s159, 1
    %p163 = scmp.eq.s32.totalorder %s15, 1
    %p164 = scmp.ne.s32.totalorder %s159, %s161
    %p165 = scmp.eq.s32.totalorder %s15, 0
    %p166 = por %p164, %p165
    %p167 = scmp.ne.s32.totalorder %s159, %s161
    %p168 = scmp.eq.s32.totalorder %s20, 1
    %p169 = por %p167, %p168
    %p170 = scmp.ne.s32.totalorder %s161, %s162
    %p171 = scmp.eq.s32.totalorder %s20, 0
    %p172 = por %p170, %p171
    %p173 = scmp.ne.s32.totalorder %s161, %s162
    %p174 = scmp.eq.s32.totalorder %s21, 1
    %p175 = por %p173, %p174
    %p177 = scmp.ne.s32.totalorder %s162, %s176
    %p178 = scmp.eq.s32.totalorder %s21, 0
    %p179 = por %p177, %p178
    %s181 = sadd.s32 %s180, 1
    %p184 = scmp.eq.s32.totalorder %s15, 1
    %p185 = scmp.ne.s32.totalorder %s180, %s182
    %p186 = scmp.eq.s32.totalorder %s15, 0
    %p187 = por %p185, %p186
    %p188 = scmp.ne.s32.totalorder %s180, %s182
    %p189 = scmp.eq.s32.totalorder %s20, 1
    %p190 = por %p188, %p189
    %p191 = scmp.ne.s32.totalorder %s182, %s183
    %p192 = scmp.eq.s32.totalorder %s20, 0
    %p193 = por %p191, %p192
    %p194 = scmp.ne.s32.totalorder %s182, %s183
    %p195 = scmp.eq.s32.totalorder %s21, 1
    %p196 = por %p194, %p195
    %p198 = scmp.ne.s32.totalorder %s183, %s197
    %p199 = scmp.eq.s32.totalorder %s21, 0
    %p200 = por %p198, %p199
    %s202 = sadd.s32 %s201, 1
    %p205 = scmp.eq.s32.totalorder %s15, 1
    %p206 = scmp.ne.s32.totalorder %s201, %s203
    %p207 = scmp.eq.s32.totalorder %s15, 0
    %p208 = por %p206, %p207
    %p209 = scmp.ne.s32.totalorder %s201, %s203
    %p210 = scmp.eq.s32.totalorder %s20, 1
    %p211 = por %p209, %p210
    %p212 = scmp.ne.s32.totalorder %s203, %s204
    %p213 = scmp.eq.s32.totalorder %s20, 0
    %p214 = por %p212, %p213
    %p215 = scmp.ne.s32.totalorder %s203, %s204
    %p216 = scmp.eq.s32.totalorder %s21, 1
    %p217 = por %p215, %p216
    %p219 = scmp.ne.s32.totalorder %s204, %s218
    %p220 = scmp.eq.s32.totalorder %s21, 0
    %p221 = por %p219, %p220
    %s222 = ssub.s32 %s15, %s22
    %p223 = scmp.eq.s32.totalorder %s222, 0
    %s225 = sadd.s32 %s224, 1
    %s226 = scalar_select %p223, %s224, %s225
    %p229 = pneg %p223
    %p230 = scmp.eq.s32.totalorder %s15, 1
    %p231 = por %p229, %p230
    %p232 = scmp.ne.s32.totalorder %s224, %s227
    %p233 = scmp.eq.s32.totalorder %s15, 0
    %p234 = por %p232, %p233
    %p235 = scmp.ne.s32.totalorder %s224, %s227
    %p236 = scmp.eq.s32.totalorder %s20, 1
    %p237 = por %p235, %p236
    %p238 = scmp.ne.s32.totalorder %s227, %s228
    %p239 = scmp.eq.s32.totalorder %s20, 0
    %p240 = por %p238, %p239
    %p241 = scmp.ne.s32.totalorder %s227, %s228
    %p242 = scmp.eq.s32.totalorder %s21, 1
    %p243 = por %p241, %p242
    %p245 = scmp.ne.s32.totalorder %s228, %s244
    %p246 = scmp.eq.s32.totalorder %s21, 0
    %p247 = por %p245, %p246
    %p248 = scmp.le.s32.totalorder 1, %s15
    %p249 = scmp.lt.s32.totalorder %s15, 3
    %p250 = pnand %p248, %p249
    %p251 = pneg %p250
    // Predicated region
    $region9: #{tpu_custom_call.1} parent=5 // pred_check
      _
    $region10: #{tpu_custom_call.1} parent=5 // pred_check_branch
      %253 = sbr.rel (%p250) target = $region12
    $region11: #{tpu_custom_call.1} parent=5 // pred_region
      %s254 = ssub.s32 %s15, 1
      // Predicated region
      $region13: #{tpu_custom_call.1} parent=11 // pred_check
        %p255 = pneg %p88
      $region14: #{tpu_custom_call.1} parent=11 // pred_check_branch
        %257 = sbr.rel (%p255) target = $region16
      $region15: #{tpu_custom_call.1} parent=11 // pred_region
        _
      $region16: #{tpu_custom_call.1} parent=11 // pred_fallthru
        _
      // Predicated region
      $region17: #{tpu_custom_call.1} parent=11 // pred_check
        %p258 = pneg %p109
      $region18: #{tpu_custom_call.1} parent=11 // pred_check_branch
        %260 = sbr.rel (%p258) target = $region20
      $region19: #{tpu_custom_call.1} parent=11 // pred_region
        _
      $region20: #{tpu_custom_call.1} parent=11 // pred_fallthru
        _
      // Predicated region
      $region21: #{tpu_custom_call.1} parent=11 // pred_check
        %p261 = pneg %p130
      $region22: #{tpu_custom_call.1} parent=11 // pred_check_branch
        %263 = sbr.rel (%p261) target = $region24
      $region23: #{tpu_custom_call.1} parent=11 // pred_region
        _
      $region24: #{tpu_custom_call.1} parent=11 // pred_fallthru
        _
      // Predicated region
      $region25: #{tpu_custom_call.1} parent=11 // pred_check
        %p264 = pneg %p151
      $region26: #{tpu_custom_call.1} parent=11 // pred_check_branch
        %266 = sbr.rel (%p264) target = $region28
      $region27: #{tpu_custom_call.1} parent=11 // pred_region
        _
      $region28: #{tpu_custom_call.1} parent=11 // pred_fallthru
        _
      // Predicated region
      $region29: #{tpu_custom_call.1} parent=11 // pred_check
        %p267 = pneg %p172
      $region30: #{tpu_custom_call.1} parent=11 // pred_check_branch
        %269 = sbr.rel (%p267) target = $region32
      $region31: #{tpu_custom_call.1} parent=11 // pred_region
        _
      $region32: #{tpu_custom_call.1} parent=11 // pred_fallthru
        _
      // Predicated region
      $region33: #{tpu_custom_call.1} parent=11 // pred_check
        %p270 = pneg %p193
      $region34: #{tpu_custom_call.1} parent=11 // pred_check_branch
        %272 = sbr.rel (%p270) target = $region36
      $region35: #{tpu_custom_call.1} parent=11 // pred_region
        _
      $region36: #{tpu_custom_call.1} parent=11 // pred_fallthru
        _
      // Predicated region
      $region37: #{tpu_custom_call.1} parent=11 // pred_check
        %p273 = pneg %p214
      $region38: #{tpu_custom_call.1} parent=11 // pred_check_branch
        %275 = sbr.rel (%p273) target = $region40
      $region39: #{tpu_custom_call.1} parent=11 // pred_region
        _
      $region40: #{tpu_custom_call.1} parent=11 // pred_fallthru
        _
    $region12: #{tpu_custom_call.1} parent=5 // pred_fallthru
      _
    %p276 = scmp.lt.s32.totalorder %s15, 2
    // Predicated region
    $region41: #{tpu_custom_call.1} parent=5 // pred_check
      %p277 = pneg %p276
    $region42: #{tpu_custom_call.1} parent=5 // pred_check_branch
      %279 = sbr.rel (%p277) target = $region44
    $region43: #{tpu_custom_call.1} parent=5 // pred_region
      // Predicated region
      $region45: #{tpu_custom_call.1} parent=43 // pred_check
        %p280 = pneg %p35
      $region46: #{tpu_custom_call.1} parent=43 // pred_check_branch
        %282 = sbr.rel (%p280) target = $region48
      $region47: #{tpu_custom_call.1} parent=43 // pred_region
        %s283 = smul.u32 4, %s15
        %p284 = scmp.lt.s32.totalorder %s283, 7
        %s285 = scalar_select %p284, %s283, 7
        %s286 = smul.addr %s285, 8
        %s287 = scalar_lea.vmem %s0, %s286
        %s288 = smul.u32 4, %s15
      $region48: #{tpu_custom_call.1} parent=43 // pred_fallthru
        _
      // Predicated region
      $region49: #{tpu_custom_call.1} parent=43 // pred_check
        %p289 = pneg %p61
      $region50: #{tpu_custom_call.1} parent=43 // pred_check_branch
        %291 = sbr.rel (%p289) target = $region52
      $region51: #{tpu_custom_call.1} parent=43 // pred_region
        %s292 = smul.u32 4, %s15
        %p293 = scmp.lt.s32.totalorder %s292, 7
        %s294 = scalar_select %p293, %s292, 7
        %s295 = smul.addr %s294, 8
        %s296 = scalar_lea.vmem %s1, %s295
        %s297 = smul.u32 4, %s15
      $region52: #{tpu_custom_call.1} parent=43 // pred_fallthru
        _
    $region44: #{tpu_custom_call.1} parent=5 // pred_fallthru
      _
    %p298 = scmp.le.s32.totalorder 1, %s15
    %p299 = scmp.lt.s32.totalorder %s15, 3
    %p300 = pnand %p298, %p299
    %p301 = pneg %p300
    // Predicated region
    $region53: #{tpu_custom_call.1} parent=5 // pred_check
      _
    $region54: #{tpu_custom_call.1} parent=5 // pred_check_branch
      %303 = sbr.rel (%p300) target = $region56
    $region55: #{tpu_custom_call.1} parent=5 // pred_region
      %s304 = ssub.s32 %s15, 1
      %s305 = smul.u32 4, %s20
      %p306 = scmp.lt.s32.totalorder %s305, 7
      %s307 = scalar_select %p306, %s305, 7
      %s308 = smul.addr %s307, 8
      %s309 = scalar_lea.vmem %s0, %s308
      %p310 = pneg %p41
      %p311 = pneg %p38
      %s312 = smul.u32 4, %s20
      %p313 = scmp.lt.s32.totalorder %s312, 7
      %s314 = scalar_select %p313, %s312, 7
      %s315 = smul.addr %s314, 8
      %s316 = scalar_lea.vmem %s1, %s315
      %p317 = pneg %p67
      %p318 = pneg %p64
      %p319 = pneg %p88
      %p320 = pneg %p85
      %p321 = pneg %p109
      %p322 = pneg %p106
      %p323 = pneg %p130
      %p324 = pneg %p127
      %p325 = pneg %p151
      %p326 = pneg %p148
      %p327 = pneg %p172
      %p328 = pneg %p169
      %p329 = pneg %p193
      %p330 = pneg %p190
      %p331 = pneg %p214
      %p332 = pneg %p211
      %p333 = pneg %p240
      %p334 = pneg %p237
      %s335 = smul.u32 4, %s20
      %p336 = scmp.lt.s32.totalorder %s335, 7
      %s337 = scalar_select %p336, %s335, 7
      %s338 = smul.addr %s337, 8
      %s339 = scalar_lea.vmem %s9, %s338
      %s340 = smul.u32 4, %s20
      %p341 = scmp.lt.s32.totalorder %s340, 7
      %s342 = scalar_select %p341, %s340, 7
      %s343 = smul.addr %s342, 8
      %s344 = scalar_lea.vmem %s0, %s343
      %s345 = smul.u32 4, %s20
      %s346 = smul.u32 4, %s20
      %p347 = scmp.lt.s32.totalorder %s346, 7
      %s348 = scalar_select %p347, %s346, 7
      %s349 = smul.addr %s348, 8
      %s350 = scalar_lea.vmem %s1, %s349
      %s351 = smul.u32 4, %s20
      %s352 = smul.u32 4, %s20
      %p353 = scmp.lt.s32.totalorder %s352, 7
      %s354 = scalar_select %p353, %s352, 7
      %s355 = smul.addr %s354, 8
      %s356 = scalar_lea.vmem %s9, %s355
      %s357 = smul.u32 4, %s20
      %v358 = vld [vmem:[%s344] sm:$0xff]
      %v359 = vld [vmem:[%s344 + $0x8] sm:$0xff]
      %v360 = vld [vmem:[%s344 + $0x10] sm:$0xff]
      %v361 = vld [vmem:[%s344 + $0x18] sm:$0xff]
      %v362 = vld [vmem:[%s2] sm:$0xff]
      %v363 = vld [vmem:[%s350] sm:$0xff]
      %v364 = vld [vmem:[%s350 + $0x8] sm:$0xff]
      %v365 = vld [vmem:[%s350 + $0x10] sm:$0xff]
      %v366 = vld [vmem:[%s350 + $0x18] sm:$0xff]
      %v367 = vld [vmem:[%s3] sm:$0xff]
      %vm368 = vcmask 64512
      %v370 = vsel %vm368, %v363, 0
      %v373 = vsel %vm368, %v364, 0
      %v376 = vsel %vm368, %v365, 0
      %v379 = vsel %vm368, %v366, 0
      %381 = vmatpush.msra.mxu0 0.0
      %382 = vmatpush.msra.mxu0 0.0
      %383 = vmatpush.msra.mxu0 0.0
      %384 = vmatpush.msra.mxu0 0.0
      %385 = vmatpush.msra.mxu0 0.0
      %386 = vmatpush.msra.mxu0 0.0
      %387 = vmatpush.msra.mxu0 0.0
      %388 = vmatpush.msra.mxu0 0.0
      %389 = vmatpush.msra.mxu0 0.0
      %390 = vmatpush.msra.mxu0 0.0
      %391 = vmatpush.msra.mxu0 0.0
      %392 = vmatpush.msra.mxu0 0.0
      %393 = vmatpush.msra.mxu0 0.0
      %394 = vmatpush.msra.mxu0 0.0
      %395 = vmatpush.msra.mxu0 0.0
      %396 = vmatpush.msra.mxu0 %v367
      %397 = vmatmul.f32.gmra.mxu0 %v370
      %v398 = vpop.f32.mrf.mxu0
      %v399 = vadd.f32 0.0, %v398
      %400 = vmatmul.f32.gmra.mxu0 %v373
      %v401 = vpop.f32.mrf.mxu0
      %v402 = vadd.f32 0.0, %v401
      %403 = vmatmul.f32.gmra.mxu0 %v376
      %v404 = vpop.f32.mrf.mxu0
      %v405 = vadd.f32 0.0, %v404
      %406 = vmatmul.f32.gmra.mxu0 %v379
      %v407 = vpop.f32.mrf.mxu0
      %v408 = vadd.f32 0.0, %v407
      %409 = vdwg.mxu0
      %v411 = vsel %vm368, %v358, 0
      %v414 = vsel %vm368, %v359, 0
      %v417 = vsel %vm368, %v360, 0
      %v420 = vsel %vm368, %v361, 0
      %422 = vmatpush.msra.mxu0 0.0
      %423 = vmatpush.msra.mxu0 0.0
      %424 = vmatpush.msra.mxu0 0.0
      %425 = vmatpush.msra.mxu0 0.0
      %426 = vmatpush.msra.mxu0 0.0
      %427 = vmatpush.msra.mxu0 0.0
      %428 = vmatpush.msra.mxu0 0.0
      %429 = vmatpush.msra.mxu0 0.0
      %430 = vmatpush.msra.mxu0 0.0
      %431 = vmatpush.msra.mxu0 0.0
      %432 = vmatpush.msra.mxu0 0.0
      %433 = vmatpush.msra.mxu0 0.0
      %434 = vmatpush.msra.mxu0 0.0
      %435 = vmatpush.msra.mxu0 0.0
      %436 = vmatpush.msra.mxu0 0.0
      %437 = vmatpush.msra.mxu0 %v362
      %438 = vmatmul.f32.gmra.mxu0 %v411
      %v439 = vpop.f32.mrf.mxu0
      %v440 = vadd.f32 %v399, %v439
      %441 = vmatmul.f32.gmra.mxu0 %v414
      %v442 = vpop.f32.mrf.mxu0
      %v443 = vadd.f32 %v402, %v442
      %444 = vmatmul.f32.gmra.mxu0 %v417
      %v445 = vpop.f32.mrf.mxu0
      %v446 = vadd.f32 %v405, %v445
      %447 = vmatmul.f32.gmra.mxu0 %v420
      %v448 = vpop.f32.mrf.mxu0
      %v449 = vadd.f32 %v408, %v448
      %450 = vdwg.mxu0
      %v451 = vld [vmem:[%s4] sm:$0x1]
      %v453 = vperm.slane %v451, 0
      %v455 = vadd.f32 %v440, %v453
      %v456 = vadd.f32 %v443, %v453
      %v457 = vadd.f32 %v446, %v453
      %v458 = vadd.f32 %v449, %v453
      %v459 = vmax.f32 %v455, 0.0
      %v460 = vmax.f32 %v456, 0.0
      %v461 = vmax.f32 %v457, 0.0
      %v462 = vmax.f32 %v458, 0.0
      %v463 = vld [vmem:[%s5] sm:$0xff]
      %v464 = vld [vmem:[%s5 + $0x8] sm:$0xff]
      %v465 = vld [vmem:[%s5 + $0x10] sm:$0xff]
      %v466 = vld [vmem:[%s5 + $0x18] sm:$0xff]
      %v467 = vld [vmem:[%s5 + $0x20] sm:$0xff]
      %v468 = vld [vmem:[%s5 + $0x28] sm:$0xff]
      %v469 = vld [vmem:[%s5 + $0x30] sm:$0xff]
      %v470 = vld [vmem:[%s5 + $0x38] sm:$0xff]
      %v471 = vld [vmem:[%s5 + $0x40] sm:$0xff]
      %v472 = vld [vmem:[%s5 + $0x48] sm:$0xff]
      %v473 = vld [vmem:[%s5 + $0x50] sm:$0xff]
      %v474 = vld [vmem:[%s5 + $0x58] sm:$0xff]
      %v475 = vld [vmem:[%s5 + $0x60] sm:$0xff]
      %v476 = vld [vmem:[%s5 + $0x68] sm:$0xff]
      %v477 = vld [vmem:[%s5 + $0x70] sm:$0xff]
      %v478 = vld [vmem:[%s5 + $0x78] sm:$0xff]
      %v479 = vld [vmem:[%s6] sm:$0x1]
      %v481 = vperm.slane %v479, 0
      %483 = vmatpush.msra.mxu0 %v478
      %484 = vmatpush.msra.mxu0 %v477
      %485 = vmatpush.msra.mxu0 %v476
      %486 = vmatpush.msra.mxu0 %v475
      %487 = vmatpush.msra.mxu0 %v474
      %488 = vmatpush.msra.mxu0 %v473
      %489 = vmatpush.msra.mxu0 %v472
      %490 = vmatpush.msra.mxu0 %v471
      %491 = vmatpush.msra.mxu0 %v470
      %492 = vmatpush.msra.mxu0 %v469
      %493 = vmatpush.msra.mxu0 %v468
      %494 = vmatpush.msra.mxu0 %v467
      %495 = vmatpush.msra.mxu0 %v466
      %496 = vmatpush.msra.mxu0 %v465
      %497 = vmatpush.msra.mxu0 %v464
      %498 = vmatpush.msra.mxu0 %v463
      %499 = vmatmul.f32.gmra.mxu0 %v459
      %v500 = vpop.f32.mrf.mxu0
      %v501 = vadd.f32 %v481, %v500
      %502 = vmatmul.f32.gmra.mxu0 %v460
      %v503 = vpop.f32.mrf.mxu0
      %v504 = vadd.f32 %v481, %v503
      %505 = vmatmul.f32.gmra.mxu0 %v461
      %v506 = vpop.f32.mrf.mxu0
      %v507 = vadd.f32 %v481, %v506
      %508 = vmatmul.f32.gmra.mxu0 %v462
      %v509 = vpop.f32.mrf.mxu0
      %v510 = vadd.f32 %v481, %v509
      %511 = vdwg.mxu0
      %v512 = vmax.f32 %v501, 0.0
      %v513 = vmax.f32 %v504, 0.0
      %v514 = vmax.f32 %v507, 0.0
      %v515 = vmax.f32 %v510, 0.0
      %v516 = vld [vmem:[%s7] sm:$0xff]
      %v517 = vld [vmem:[%s7 + $0x8] sm:$0xff]
      %v518 = vld [vmem:[%s7 + $0x10] sm:$0xff]
      %v519 = vld [vmem:[%s7 + $0x18] sm:$0xff]
      %v520 = vld [vmem:[%s7 + $0x20] sm:$0xff]
      %v521 = vld [vmem:[%s7 + $0x28] sm:$0xff]
      %v522 = vld [vmem:[%s7 + $0x30] sm:$0xff]
      %v523 = vld [vmem:[%s7 + $0x38] sm:$0xff]
      %v524 = vld [vmem:[%s7 + $0x40] sm:$0xff]
      %v525 = vld [vmem:[%s7 + $0x48] sm:$0xff]
      %v526 = vld [vmem:[%s7 + $0x50] sm:$0xff]
      %v527 = vld [vmem:[%s7 + $0x58] sm:$0xff]
      %v528 = vld [vmem:[%s7 + $0x60] sm:$0xff]
      %v529 = vld [vmem:[%s7 + $0x68] sm:$0xff]
      %v530 = vld [vmem:[%s7 + $0x70] sm:$0xff]
      %v531 = vld [vmem:[%s7 + $0x78] sm:$0xff]
      %v532 = vld [vmem:[%s8] sm:$0x1]
      %v534 = vperm.slane %v532, 0
      %536 = vmatpush.msra.mxu0 %v531
      %537 = vmatpush.msra.mxu0 %v530
      %538 = vmatpush.msra.mxu0 %v529
      %539 = vmatpush.msra.mxu0 %v528
      %540 = vmatpush.msra.mxu0 %v527
      %541 = vmatpush.msra.mxu0 %v526
      %542 = vmatpush.msra.mxu0 %v525
      %543 = vmatpush.msra.mxu0 %v524
      %544 = vmatpush.msra.mxu0 %v523
      %545 = vmatpush.msra.mxu0 %v522
      %546 = vmatpush.msra.mxu0 %v521
      %547 = vmatpush.msra.mxu0 %v520
      %548 = vmatpush.msra.mxu0 %v519
      %549 = vmatpush.msra.mxu0 %v518
      %550 = vmatpush.msra.mxu0 %v517
      %551 = vmatpush.msra.mxu0 %v516
      %552 = vmatmul.f32.gmra.mxu0 %v512
      %v553 = vpop.f32.mrf.mxu0
      %v554 = vadd.f32 %v534, %v553
      %555 = vmatmul.f32.gmra.mxu0 %v513
      %v556 = vpop.f32.mrf.mxu0
      %v557 = vadd.f32 %v534, %v556
      %558 = vmatmul.f32.gmra.mxu0 %v514
      %v559 = vpop.f32.mrf.mxu0
      %v560 = vadd.f32 %v534, %v559
      %561 = vmatmul.f32.gmra.mxu0 %v515
      %v562 = vpop.f32.mrf.mxu0
      %v563 = vadd.f32 %v534, %v562
      %564 = vdwg.mxu0
      %v565 = vxor.u32 %v554, 2147483648
      %v566 = vxor.u32 %v557, 2147483648
      %v567 = vxor.u32 %v560, 2147483648
      %v568 = vxor.u32 %v563, 2147483648
      %v569 = vmul.f32 %v565, 1.442695
      %v570 = vpow.pop %v569
      %v571 = vmul.f32 %v566, 1.442695
      %v572 = vpow.pop %v571
      %v573 = vmul.f32 %v567, 1.442695
      %v574 = vpow.pop %v573
      %v575 = vmul.f32 %v568, 1.442695
      %v576 = vpow.pop %v575
      %v577 = vadd.f32 %v570, 1.0
      %v578 = vadd.f32 %v572, 1.0
      %v579 = vadd.f32 %v574, 1.0
      %v580 = vadd.f32 %v576, 1.0
      %v581 = vrcp.pop %v577
      %v582 = vmul.f32 %v577, %v581
      %v583 = vsub.f32 1.0, %v582
      %v584 = vmul.f32 %v581, %v583
      %v585 = vadd.f32 %v581, %v584
      %vm586 = vweird.f32 %v577
      %vm587 = vweird.f32 %v581
      %vm588 = vmor %vm586, %vm587
      %v589 = vsel %vm588, %v581, %v585
      %v590 = vand.u32 2147483647, %v577
      %vm591 = vcmp.eq.f32.partialorder %v590, 8.507059e+37
      %v592 = vand.u32 %v577, 2147483648
      %v593 = vor.u32 1.1754944e-38, %v592
      %v594 = vsel %vm591, %v593, %v589
      %v595 = vmul.f32 1.0, %v594
      %v596 = vrcp.pop %v578
      %v597 = vmul.f32 %v578, %v596
      %v598 = vsub.f32 1.0, %v597
      %v599 = vmul.f32 %v596, %v598
      %v600 = vadd.f32 %v596, %v599
      %vm601 = vweird.f32 %v578
      %vm602 = vweird.f32 %v596
      %vm603 = vmor %vm601, %vm602
      %v604 = vsel %vm603, %v596, %v600
      %v605 = vand.u32 2147483647, %v578
      %vm606 = vcmp.eq.f32.partialorder %v605, 8.507059e+37
      %v607 = vand.u32 %v578, 2147483648
      %v608 = vor.u32 1.1754944e-38, %v607
      %v609 = vsel %vm606, %v608, %v604
      %v610 = vmul.f32 1.0, %v609
      %v611 = vrcp.pop %v579
      %v612 = vmul.f32 %v579, %v611
      %v613 = vsub.f32 1.0, %v612
      %v614 = vmul.f32 %v611, %v613
      %v615 = vadd.f32 %v611, %v614
      %vm616 = vweird.f32 %v579
      %vm617 = vweird.f32 %v611
      %vm618 = vmor %vm616, %vm617
      %v619 = vsel %vm618, %v611, %v615
      %v620 = vand.u32 2147483647, %v579
      %vm621 = vcmp.eq.f32.partialorder %v620, 8.507059e+37
      %v622 = vand.u32 %v579, 2147483648
      %v623 = vor.u32 1.1754944e-38, %v622
      %v624 = vsel %vm621, %v623, %v619
      %v625 = vmul.f32 1.0, %v624
      %v626 = vrcp.pop %v580
      %v627 = vmul.f32 %v580, %v626
      %v628 = vsub.f32 1.0, %v627
      %v629 = vmul.f32 %v626, %v628
      %v630 = vadd.f32 %v626, %v629
      %vm631 = vweird.f32 %v580
      %vm632 = vweird.f32 %v626
      %vm633 = vmor %vm631, %vm632
      %v634 = vsel %vm633, %v626, %v630
      %v635 = vand.u32 2147483647, %v580
      %vm636 = vcmp.eq.f32.partialorder %v635, 8.507059e+37
      %v637 = vand.u32 %v580, 2147483648
      %v638 = vor.u32 1.1754944e-38, %v637
      %v639 = vsel %vm636, %v638, %v634
      %v640 = vmul.f32 1.0, %v639
      %641 = vst.msk [vmem:[%s356] sm:$0xff] %vm368, %v595
      %642 = vst.msk [vmem:[%s356 + $0x8] sm:$0xff] %vm368, %v610
      %643 = vst.msk [vmem:[%s356 + $0x10] sm:$0xff] %vm368, %v625
      %644 = vst.msk [vmem:[%s356 + $0x18] sm:$0xff] %vm368, %v640
      %s645 = smul.u32 4, %s20
      %p646 = scmp.lt.s32.totalorder %s645, 7
      %s647 = scalar_select %p646, %s645, 7
      %s648 = smul.addr %s647, 8
      %s649 = scalar_lea.vmem %s9, %s648
      // Predicated region
      $region57: #{tpu_custom_call.1} parent=55 // pred_check
        %p650 = pneg %p237
      $region58: #{tpu_custom_call.1} parent=55 // pred_check_branch
        %652 = sbr.rel (%p650) target = $region60
      $region59: #{tpu_custom_call.1} parent=55 // pred_region
        %s653 = smul.u32 4, %s20
      $region60: #{tpu_custom_call.1} parent=55 // pred_fallthru
        _
    $region56: #{tpu_custom_call.1} parent=5 // pred_fallthru
      _
    %p654 = scmp.le.s32.totalorder 2, %s15
    // Predicated region
    $region61: #{tpu_custom_call.1} parent=5 // pred_check
      %p655 = pneg %p654
    $region62: #{tpu_custom_call.1} parent=5 // pred_check_branch
      %657 = sbr.rel (%p655) target = $region64
    $region63: #{tpu_custom_call.1} parent=5 // pred_region
      %s658 = ssub.s32 %s15, 2
      // Predicated region
      $region65: #{tpu_custom_call.1} parent=63 // pred_check
        %p659 = pneg %p243
      $region66: #{tpu_custom_call.1} parent=63 // pred_check_branch
        %661 = sbr.rel (%p659) target = $region68
      $region67: #{tpu_custom_call.1} parent=63 // pred_region
        %s662 = smul.u32 4, %s21
        %p663 = scmp.lt.s32.totalorder %s662, 7
        %s664 = scalar_select %p663, %s662, 7
        %s665 = smul.addr %s664, 8
        %s666 = scalar_lea.vmem %s9, %s665
      $region68: #{tpu_custom_call.1} parent=63 // pred_fallthru
        _
    $region64: #{tpu_custom_call.1} parent=5 // pred_fallthru
      _
  $region6: #{tpu_custom_call.1} parent=0 // loop_footer
    %s19 = sadd.s32 1, %s15
  $region7: #{tpu_custom_call.1} parent=0 // loop_footer_branch
    %14 = sbr.rel target = $region3
  $region8: #{tpu_custom_call.1} parent=0 // loop_exit
    _

</llo_original>
